<compile_context>
chip_gen: v6e
topology: v6e:2x2x1
jax: 0.10.0
libtpu: 0.0.40
codegen_flags: <defaults>
</compile_context>

<pallas_src>
import functools

import jax
import jax.numpy as jnp
from jax.experimental import pallas as pl
from jax.experimental.pallas import tpu as pltpu

LANE = 128
SUBLANE = 8


def _round_up(n, m):
    return ((n + m - 1) // m) * m


def _gapnet_fused_kernel(*refs, n_layers):
    """Fused MLP on one (TM, K0p) activation tile.

    refs = (x_ref, w1_ref, b1_ref, ..., wn_ref, bn_ref, o_ref).
    Hidden layers: y = relu(x @ W + b); last layer: y = x @ W + b.
    Intermediates live in vregs (bf16 between layers, f32 accumulation).
    """
    x_ref = refs[0]
    o_ref = refs[-1]
    h = x_ref[...]
    for i in range(n_layers):
        w_ref = refs[1 + 2 * i]
        b_ref = refs[2 + 2 * i]
        acc = jnp.dot(h, w_ref[...], preferred_element_type=jnp.float32)
        acc = acc + b_ref[...].astype(jnp.float32)  # (1, N) broadcasts over rows
        if i < n_layers - 1:
            # ReLU. TODO(synk): training-mode dropout (pltpu.prng_* masking) not implemented.
            h = jnp.maximum(acc, 0.0).astype(w_ref.dtype)
        else:
            o_ref[...] = acc.astype(o_ref.dtype)


def init_gapnet_params(key, model_layer):
    """Deterministic init matching the shapes of the nn.Linear layers."""
    params = []
    for i in range(len(model_layer) - 1):
        fan_in, fan_out = model_layer[i], model_layer[i + 1]
        key, kw, kb = jax.random.split(key, 3)
        bound = 1.0 / jnp.sqrt(fan_in)
        w = jax.random.uniform(kw, (fan_in, fan_out), jnp.float32, -bound, bound)
        b = jax.random.uniform(kb, (fan_out,), jnp.float32, -bound, bound)
        params.append((w, b))
    return params


def prepare_gapnet_params(params, compute_dtype=jnp.bfloat16):
    """Zero-pad every feature dim up to a multiple of 128 (lane-dense) and cast
    to the compute dtype. Done once, outside the per-call path."""
    padded = []
    for w, b in params:
        k, n = w.shape
        kp, np_ = _round_up(k, LANE), _round_up(n, LANE)
        w_p = jnp.zeros((kp, np_), compute_dtype).at[:k, :n].set(w.astype(compute_dtype))
        b_p = jnp.zeros((1, np_), compute_dtype).at[0, :n].set(b.astype(compute_dtype))
        padded.append((w_p, b_p))
    return padded


def gapnet_forward_fused(x, padded_params, out_features, block_m=128):
    """Forward pass of GapNet as a single fused Pallas kernel.

    x: (M, K) f32. padded_params: output of prepare_gapnet_params.
    Returns (M, out_features) f32.
    """
    m, k = x.shape
    n_layers = len(padded_params)
    compute_dtype = padded_params[0][0].dtype
    k0p = padded_params[0][0].shape[0]
    n_out_p = padded_params[-1][0].shape[1]

    # Tile the batch axis; for tiny batches a single 8-row-aligned tile.
    tm = block_m if m >= block_m else _round_up(m, SUBLANE)
    mp = _round_up(m, tm)

    x_p = jnp.zeros((mp, k0p), compute_dtype).at[:m, :k].set(x.astype(compute_dtype))

    # Activation tile streams over the grid; weights/biases stay VMEM-resident
    # (index_map returns (0, 0) for every batch tile).
    in_specs = [pl.BlockSpec((tm, k0p), lambda i: (i, 0))]
    flat_args = [x_p]
    for w_p, b_p in padded_params:
        kin, kout = w_p.shape
        in_specs.append(pl.BlockSpec((kin, kout), lambda i: (0, 0)))
        in_specs.append(pl.BlockSpec((1, kout), lambda i: (0, 0)))
        flat_args.extend([w_p, b_p])

    out = pl.pallas_call(
        functools.partial(_gapnet_fused_kernel, n_layers=n_layers),
        out_shape=jax.ShapeDtypeStruct((mp, n_out_p), jnp.float32),
        grid=(mp // tm,),
        in_specs=in_specs,
        out_specs=pl.BlockSpec((tm, n_out_p), lambda i: (i, 0)),
        compiler_params=pltpu.CompilerParams(
            # Batch tiles are independent -> shard across TensorCores (v7x megacore).
            dimension_semantics=("parallel",),
            # Explicit, conservative scoped-VMEM cap (safe on v7x's 64 MiB VMEM).
            vmem_limit_bytes=32 * 1024 * 1024,
        ),
    )(*flat_args)

    return out[:m, :out_features]


def gapnet_reference(x, params, compute_dtype=jnp.float32):
    """Pure-JAX reference (optionally with bf16 operands to match the kernel)."""
    h = x.astype(compute_dtype)
    for idx, (w, b) in enumerate(params):
        h = jnp.dot(h, w.astype(compute_dtype),
                    preferred_element_type=jnp.float32) + b.astype(jnp.float32)
        if idx != len(params) - 1:
            h = jnp.maximum(h, 0.0).astype(compute_dtype)
    return h.astype(jnp.float32)


if __name__ == "__main__":
    # model_layer = [in, hidden, hidden, out]
    model_layer = [32, 64, 64, 16]
    batch = 8

    key = jax.random.PRNGKey(0)
    key, kx = jax.random.split(key)
    x = jax.random.normal(kx, (batch, model_layer[0]), dtype=jnp.float32)

    params = init_gapnet_params(key, model_layer)
    padded_params = prepare_gapnet_params(params)  # pad + cast once, outside the hot path

    fwd = jax.jit(gapnet_forward_fused, static_argnums=(2, 3))
    out = fwd(x, padded_params, model_layer[-1], 128)
    out = jax.block_until_ready(out)

    assert out.shape == (batch, model_layer[-1])

    # Tight check vs a bf16-operand / f32-accumulate reference (matches kernel math).
    ref_bf16 = gapnet_reference(x, params, compute_dtype=jnp.bfloat16)
    assert jnp.allclose(out, ref_bf16, atol=2e-2, rtol=2e-2), "mismatch vs bf16 reference"

    # Looser check vs the full-f32 reference (bf16 operand rounding only).
    ref_f32 = gapnet_reference(x, params, compute_dtype=jnp.float32)
    assert jnp.allclose(out, ref_f32, atol=1e-1, rtol=1e-1), "mismatch vs f32 reference"

    print("KERNEL_OK")
</pallas_src>

<mosaic_0001>
module attributes {stable_mosaic.version = 11 : i64} {
  func.func @_gapnet_fused_kernel(%arg0: i32, %arg1: memref<8x128xbf16, #tpu.memory_space<vmem>>, %arg2: memref<128x128xbf16, #tpu.memory_space<vmem>>, %arg3: memref<1x128xbf16, #tpu.memory_space<vmem>>, %arg4: memref<128x128xbf16, #tpu.memory_space<vmem>>, %arg5: memref<1x128xbf16, #tpu.memory_space<vmem>>, %arg6: memref<128x128xbf16, #tpu.memory_space<vmem>>, %arg7: memref<1x128xbf16, #tpu.memory_space<vmem>>, %arg8: memref<8x128xf32, #tpu.memory_space<vmem>>) attributes {dimension_semantics = [#tpu.dimension_semantics<parallel>], iteration_bounds = array<i64: 1>, scalar_prefetch = 0 : i64, scratch_operands = 0 : i64, tpu.core_type = #tpu.core_type<tc>, window_params = [{transform_indices = @transform_0, window_bounds = array<i64: 8, 128>}, {pipeline_mode = #tpu.pipeline_mode<synchronous>, transform_indices = @transform_1, window_bounds = array<i64: 128, 128>}, {pipeline_mode = #tpu.pipeline_mode<synchronous>, transform_indices = @transform_2, window_bounds = array<i64: 1, 128>}, {pipeline_mode = #tpu.pipeline_mode<synchronous>, transform_indices = @transform_3, window_bounds = array<i64: 128, 128>}, {pipeline_mode = #tpu.pipeline_mode<synchronous>, transform_indices = @transform_4, window_bounds = array<i64: 1, 128>}, {pipeline_mode = #tpu.pipeline_mode<synchronous>, transform_indices = @transform_5, window_bounds = array<i64: 128, 128>}, {pipeline_mode = #tpu.pipeline_mode<synchronous>, transform_indices = @transform_6, window_bounds = array<i64: 1, 128>}, {transform_indices = @transform_7, window_bounds = array<i64: 8, 128>}]} {
    %c0 = arith.constant 0 : index
    %c0_0 = arith.constant 0 : index
    %0 = vector.load %arg1[%c0, %c0_0] : memref<8x128xbf16, #tpu.memory_space<vmem>>, vector<8x128xbf16>
    %c0_1 = arith.constant 0 : index
    %c0_2 = arith.constant 0 : index
    %1 = vector.load %arg2[%c0_1, %c0_2] : memref<128x128xbf16, #tpu.memory_space<vmem>>, vector<128x128xbf16>
    %cst = arith.constant dense<0.000000e+00> : vector<8x128xf32>
    %2 = tpu.matmul %0, %1, %cst {dimension_numbers = #tpu.dot_dimension_numbers<[1], [0], [0], [1], [0, 0, 1, 1], [], []>} : vector<8x128xbf16>, vector<128x128xbf16>, vector<8x128xf32> -> vector<8x128xf32>
    %c0_3 = arith.constant 0 : index
    %c0_4 = arith.constant 0 : index
    %3 = vector.load %arg3[%c0_3, %c0_4] : memref<1x128xbf16, #tpu.memory_space<vmem>>, vector<1x128xbf16>
    %4 = arith.extf %3 : vector<1x128xbf16> to vector<1x128xf32>
    %5 = vector.broadcast %4 : vector<1x128xf32> to vector<8x128xf32>
    %6 = arith.addf %2, %5 : vector<8x128xf32>
    %cst_5 = arith.constant 0.000000e+00 : f32
    %7 = vector.broadcast %cst_5 : f32 to vector<8x128xf32>
    %8 = arith.maximumf %6, %7 : vector<8x128xf32>
    %9 = arith.truncf %8 : vector<8x128xf32> to vector<8x128xbf16>
    %c0_6 = arith.constant 0 : index
    %c0_7 = arith.constant 0 : index
    %10 = vector.load %arg4[%c0_6, %c0_7] : memref<128x128xbf16, #tpu.memory_space<vmem>>, vector<128x128xbf16>
    %cst_8 = arith.constant dense<0.000000e+00> : vector<8x128xf32>
    %11 = tpu.matmul %9, %10, %cst_8 {dimension_numbers = #tpu.dot_dimension_numbers<[1], [0], [0], [1], [0, 0, 1, 1], [], []>} : vector<8x128xbf16>, vector<128x128xbf16>, vector<8x128xf32> -> vector<8x128xf32>
    %c0_9 = arith.constant 0 : index
    %c0_10 = arith.constant 0 : index
    %12 = vector.load %arg5[%c0_9, %c0_10] : memref<1x128xbf16, #tpu.memory_space<vmem>>, vector<1x128xbf16>
    %13 = arith.extf %12 : vector<1x128xbf16> to vector<1x128xf32>
    %14 = vector.broadcast %13 : vector<1x128xf32> to vector<8x128xf32>
    %15 = arith.addf %11, %14 : vector<8x128xf32>
    %cst_11 = arith.constant 0.000000e+00 : f32
    %16 = vector.broadcast %cst_11 : f32 to vector<8x128xf32>
    %17 = arith.maximumf %15, %16 : vector<8x128xf32>
    %18 = arith.truncf %17 : vector<8x128xf32> to vector<8x128xbf16>
    %c0_12 = arith.constant 0 : index
    %c0_13 = arith.constant 0 : index
    %19 = vector.load %arg6[%c0_12, %c0_13] : memref<128x128xbf16, #tpu.memory_space<vmem>>, vector<128x128xbf16>
    %cst_14 = arith.constant dense<0.000000e+00> : vector<8x128xf32>
    %20 = tpu.matmul %18, %19, %cst_14 {dimension_numbers = #tpu.dot_dimension_numbers<[1], [0], [0], [1], [0, 0, 1, 1], [], []>} : vector<8x128xbf16>, vector<128x128xbf16>, vector<8x128xf32> -> vector<8x128xf32>
    %c0_15 = arith.constant 0 : index
    %c0_16 = arith.constant 0 : index
    %21 = vector.load %arg7[%c0_15, %c0_16] : memref<1x128xbf16, #tpu.memory_space<vmem>>, vector<1x128xbf16>
    %22 = arith.extf %21 : vector<1x128xbf16> to vector<1x128xf32>
    %23 = vector.broadcast %22 : vector<1x128xf32> to vector<8x128xf32>
    %24 = arith.addf %20, %23 : vector<8x128xf32>
    %c0_17 = arith.constant 0 : index
    %c0_18 = arith.constant 0 : index
    %25 = vector.load %arg8[%c0_17, %c0_18] : memref<8x128xf32, #tpu.memory_space<vmem>>, vector<8x128xf32>
    tpu.vector_store %arg8[%c0_17, %c0_18], %24 {strides = array<i32>} : memref<8x128xf32, #tpu.memory_space<vmem>>, vector<8x128xf32>,
    return
  }
  func.func @transform_0(%arg0: i32) -> (i32, i32) {
    %c0_i32 = arith.constant 0 : i32
    %c0_i32_0 = arith.constant 0 : i32
    return %arg0, %c0_i32 : i32, i32
  }
  func.func @transform_1(%arg0: i32) -> (i32, i32) {
    %c0_i32 = arith.constant 0 : i32
    %c0_i32_0 = arith.constant 0 : i32
    %c0_i32_1 = arith.constant 0 : i32
    return %c0_i32, %c0_i32_0 : i32, i32
  }
  func.func @transform_2(%arg0: i32) -> (i32, i32) {
    %c0_i32 = arith.constant 0 : i32
    %c0_i32_0 = arith.constant 0 : i32
    %c0_i32_1 = arith.constant 0 : i32
    return %c0_i32, %c0_i32_0 : i32, i32
  }
  func.func @transform_3(%arg0: i32) -> (i32, i32) {
    %c0_i32 = arith.constant 0 : i32
    %c0_i32_0 = arith.constant 0 : i32
    %c0_i32_1 = arith.constant 0 : i32
    return %c0_i32, %c0_i32_0 : i32, i32
  }
  func.func @transform_4(%arg0: i32) -> (i32, i32) {
    %c0_i32 = arith.constant 0 : i32
    %c0_i32_0 = arith.constant 0 : i32
    %c0_i32_1 = arith.constant 0 : i32
    return %c0_i32, %c0_i32_0 : i32, i32
  }
  func.func @transform_5(%arg0: i32) -> (i32, i32) {
    %c0_i32 = arith.constant 0 : i32
    %c0_i32_0 = arith.constant 0 : i32
    %c0_i32_1 = arith.constant 0 : i32
    return %c0_i32, %c0_i32_0 : i32, i32
  }
  func.func @transform_6(%arg0: i32) -> (i32, i32) {
    %c0_i32 = arith.constant 0 : i32
    %c0_i32_0 = arith.constant 0 : i32
    %c0_i32_1 = arith.constant 0 : i32
    return %c0_i32, %c0_i32_0 : i32, i32
  }
  func.func @transform_7(%arg0: i32) -> (i32, i32) {
    %c0_i32 = arith.constant 0 : i32
    %c0_i32_0 = arith.constant 0 : i32
    return %arg0, %c0_i32 : i32, i32
  }
}

</mosaic_0001>

<llo_original>
// kernel: gapnet_forward_fused.1
$region0: #{gapnet_forward_fused.1}
  #allocation0 [shape = 'u32[]', space=smem, size = 0x4, offset = 0x4, fixed_abs, tag = 'smem constant byte address 0x4 - core index']
  #allocation1 [shape = 'u32[144,128]{1,0:T(1,128)}', space=vmem, size = 0x12000, scoped, tag = 'internal scratch']
  %s0 = inlined_call_operand.vmem [shape: bf16[8,128], index: 0, kind: input, shape index: {}]
  %s1 = inlined_call_operand.hbm [shape: bf16[128,128], index: 1, kind: input, shape index: {}]
  %s2 = inlined_call_operand.vmem [shape: bf16[1,128], index: 2, kind: input, shape index: {}]
  %s3 = inlined_call_operand.hbm [shape: bf16[128,128], index: 3, kind: input, shape index: {}]
  %s4 = inlined_call_operand.vmem [shape: bf16[1,128], index: 4, kind: input, shape index: {}]
  %s5 = inlined_call_operand.hbm [shape: bf16[128,128], index: 5, kind: input, shape index: {}]
  %s6 = inlined_call_operand.vmem [shape: bf16[1,128], index: 6, kind: input, shape index: {}]
  %s7 = inlined_call_operand.hbm [shape: f32[8,128], index: 7, kind: output, shape index: {}]
  %s8 = sld [smem:[#allocation0]]
  $region50: #{gapnet_forward_fused.1} parent=0
    _
  %s10 = ssub.s32 1, %s8
  %s11 = scalar_select 0, %s10, %s8
  $region1: #{gapnet_forward_fused.1} parent=0
    #allocation2 [shape = 'u8[32768]{0}', space=vmem, size = 0x8000, scoped, tag = 'input window, operand 1, single buffered']
    #allocation3 [shape = 's32[1]{0}', space=sflag, size = 0x4, scoped, tag = 'scoped memory for gapnet_forward_fused.1']
    #allocation4 [shape = 's32[1]{0}', space=sflag, size = 0x4, scoped, tag = 'scoped memory for gapnet_forward_fused.1']
    #allocation5 [shape = 'u8[32768]{0}', space=vmem, size = 0x8000, scoped, tag = 'input window, operand 3, single buffered']
    #allocation6 [shape = 's32[1]{0}', space=sflag, size = 0x4, scoped, tag = 'scoped memory for gapnet_forward_fused.1']
    #allocation7 [shape = 'u8[32768]{0}', space=vmem, size = 0x8000, scoped, tag = 'input window, operand 5, single buffered']
    #allocation8 [shape = 'u8[4096]{0}', space=vmem, size = 0x1000, scoped, tag = 'output window, operand 0, single buffered']
    %12 = vsyncpa [#allocation3], 0
    %13 = vsyncpa [#allocation6], 0
    %14 = vsyncpa [#allocation4], 0
    // Predicated region
    $region2: #{gapnet_forward_fused.1} parent=1 // pred_check
      _
    $region3: #{gapnet_forward_fused.1} parent=1 // pred_check_branch
      %16 = sbr.rel (0) target = $region5
    $region4: #{gapnet_forward_fused.1} parent=1 // pred_region
      _
    $region5: #{gapnet_forward_fused.1} parent=1 // pred_fallthru
      _
    // Predicated region
    $region6: #{gapnet_forward_fused.1} parent=1 // pred_check
      _
    $region7: #{gapnet_forward_fused.1} parent=1 // pred_check_branch
      %18 = sbr.rel (0) target = $region9
    $region8: #{gapnet_forward_fused.1} parent=1 // pred_region
      %s20 = ssub.s32 1024, 1024
      %21 = vsyncadd [#allocation3], %s20
      %s22 = sshll.u32 [#allocation2], 4
      %s23 = int_to_ptr.vmem [resolvable:$true] %s22
      %28 = dma.hbm_to_vmem [thread:$0]  %s1, 1024, %s23, [#allocation3], 64, 64, 4
    $region9: #{gapnet_forward_fused.1} parent=1 // pred_fallthru
      _
    // Predicated region
    $region10: #{gapnet_forward_fused.1} parent=1 // pred_check
      _
    $region11: #{gapnet_forward_fused.1} parent=1 // pred_check_branch
      %30 = sbr.rel (0) target = $region13
    $region12: #{gapnet_forward_fused.1} parent=1 // pred_region
      _
    $region13: #{gapnet_forward_fused.1} parent=1 // pred_fallthru
      _
    // Predicated region
    $region14: #{gapnet_forward_fused.1} parent=1 // pred_check
      _
    $region15: #{gapnet_forward_fused.1} parent=1 // pred_check_branch
      %32 = sbr.rel (0) target = $region17
    $region16: #{gapnet_forward_fused.1} parent=1 // pred_region
      %s34 = ssub.s32 1024, 1024
      %35 = vsyncadd [#allocation6], %s34
      %s36 = sshll.u32 [#allocation5], 4
      %s37 = int_to_ptr.vmem [resolvable:$true] %s36
      %42 = dma.hbm_to_vmem [thread:$0]  %s3, 1024, %s37, [#allocation6], 64, 64, 4
    $region17: #{gapnet_forward_fused.1} parent=1 // pred_fallthru
      _
    // Predicated region
    $region18: #{gapnet_forward_fused.1} parent=1 // pred_check
      _
    $region19: #{gapnet_forward_fused.1} parent=1 // pred_check_branch
      %44 = sbr.rel (0) target = $region21
    $region20: #{gapnet_forward_fused.1} parent=1 // pred_region
      _
    $region21: #{gapnet_forward_fused.1} parent=1 // pred_fallthru
      _
    // Predicated region
    $region22: #{gapnet_forward_fused.1} parent=1 // pred_check
      _
    $region23: #{gapnet_forward_fused.1} parent=1 // pred_check_branch
      %46 = sbr.rel (0) target = $region25
    $region24: #{gapnet_forward_fused.1} parent=1 // pred_region
      %s48 = ssub.s32 1024, 1024
      %49 = vsyncadd [#allocation6], %s48
      %s50 = sshll.u32 [#allocation7], 4
      %s51 = int_to_ptr.vmem [resolvable:$true] %s50
      %56 = dma.hbm_to_vmem [thread:$0]  %s5, 1024, %s51, [#allocation6], 64, 64, 4
    $region25: #{gapnet_forward_fused.1} parent=1 // pred_fallthru
      _
    // Predicated region
    $region26: #{gapnet_forward_fused.1} parent=1 // pred_check
      _
    $region27: #{gapnet_forward_fused.1} parent=1 // pred_check_branch
      %58 = sbr.rel (0) target = $region29
    $region28: #{gapnet_forward_fused.1} parent=1 // pred_region
      _
    $region29: #{gapnet_forward_fused.1} parent=1 // pred_fallthru
      _
    // Predicated region
    $region30: #{gapnet_forward_fused.1} parent=1 // pred_check
      _
    $region31: #{gapnet_forward_fused.1} parent=1 // pred_check_branch
      %60 = sbr.rel (0) target = $region33
    $region32: #{gapnet_forward_fused.1} parent=1 // pred_region
      %61 = dma.done [#allocation3], 1024
    $region33: #{gapnet_forward_fused.1} parent=1 // pred_fallthru
      _
    // Predicated region
    $region34: #{gapnet_forward_fused.1} parent=1 // pred_check
      _
    $region35: #{gapnet_forward_fused.1} parent=1 // pred_check_branch
      %63 = sbr.rel (0) target = $region37
    $region36: #{gapnet_forward_fused.1} parent=1 // pred_region
      %64 = dma.done [#allocation6], 1024
    $region37: #{gapnet_forward_fused.1} parent=1 // pred_fallthru
      _
    // Predicated region
    $region38: #{gapnet_forward_fused.1} parent=1 // pred_check
      _
    $region39: #{gapnet_forward_fused.1} parent=1 // pred_check_branch
      %66 = sbr.rel (0) target = $region41
    $region40: #{gapnet_forward_fused.1} parent=1 // pred_region
      %67 = dma.done [#allocation6], 1024
    $region41: #{gapnet_forward_fused.1} parent=1 // pred_fallthru
      _
    %v69 = vld [vmem:[%s0] sm:$0xf]
    %v70 = vld [vmem:[#allocation2] sm:$0xf]
    %v71 = vld [vmem:[#allocation2 + $0x4] sm:$0xf]
    %v72 = vld [vmem:[#allocation2 + $0x8] sm:$0xf]
    %v73 = vld [vmem:[#allocation2 + $0xc] sm:$0xf]
    %v74 = vld [vmem:[#allocation2 + $0x10] sm:$0xf]
    %v75 = vld [vmem:[#allocation2 + $0x14] sm:$0xf]
    %v76 = vld [vmem:[#allocation2 + $0x18] sm:$0xf]
    %v77 = vld [vmem:[#allocation2 + $0x1c] sm:$0xf]
    %v78 = vld [vmem:[#allocation2 + $0x20] sm:$0xf]
    %v79 = vld [vmem:[#allocation2 + $0x24] sm:$0xf]
    %v80 = vld [vmem:[#allocation2 + $0x28] sm:$0xf]
    %v81 = vld [vmem:[#allocation2 + $0x2c] sm:$0xf]
    %v82 = vld [vmem:[#allocation2 + $0x30] sm:$0xf]
    %v83 = vld [vmem:[#allocation2 + $0x34] sm:$0xf]
    %v84 = vld [vmem:[#allocation2 + $0x38] sm:$0xf]
    %v85 = vld [vmem:[#allocation2 + $0x3c] sm:$0xf]
    %v86 = vld [vmem:[%s2] sm:$0x1]
    %v87 = vunpack.c.l.bf16 %v86
    %v88 = vlaneseq
    %v89 = vshrl.u32 %v88, 7
    %v90 = vsub.s32 0, %v89
    %v91 = vrot.slane %v87, %v90
    %v108 = vunpack.c.l.b16 %v70
    %v109 = vunpack.c.l.b16 %v71
    %v110 = vunpack.c.l.b16 %v72
    %v111 = vunpack.c.l.b16 %v73
    %v112 = vunpack.c.l.b16 %v74
    %v113 = vunpack.c.l.b16 %v75
    %v114 = vunpack.c.l.b16 %v76
    %v115 = vunpack.c.l.b16 %v77
    %v116 = vunpack.c.l.b16 %v78
    %v117 = vunpack.c.l.b16 %v79
    %v118 = vunpack.c.l.b16 %v80
    %v119 = vunpack.c.l.b16 %v81
    %v120 = vunpack.c.l.b16 %v82
    %v121 = vunpack.c.l.b16 %v83
    %v122 = vunpack.c.l.b16 %v84
    %v123 = vunpack.c.l.b16 %v85
    %v124 = vpack.c.b16 %v109, %v108
    %v125 = vpack.c.b16 %v111, %v110
    %v126 = vpack.c.b16 %v113, %v112
    %v127 = vpack.c.b16 %v115, %v114
    %v128 = vpack.c.b16 %v117, %v116
    %v129 = vpack.c.b16 %v119, %v118
    %v130 = vpack.c.b16 %v121, %v120
    %v131 = vpack.c.b16 %v123, %v122
    %140 = vmatprep.subr.bf16.mxu0 0
    %141 = vmatpush1.bf16.msra.mxu0 %v131
    %142 = vmatprep.subr.bf16.mxu0 0
    %143 = vmatpush1.bf16.msra.mxu0 %v130
    %144 = vmatprep.subr.bf16.mxu0 0
    %145 = vmatpush1.bf16.msra.mxu0 %v129
    %146 = vmatprep.subr.bf16.mxu0 0
    %147 = vmatpush1.bf16.msra.mxu0 %v128
    %148 = vmatprep.subr.bf16.mxu0 0
    %149 = vmatpush1.bf16.msra.mxu0 %v127
    %150 = vmatprep.subr.bf16.mxu0 0
    %151 = vmatpush1.bf16.msra.mxu0 %v126
    %152 = vmatprep.subr.bf16.mxu0 0
    %153 = vmatpush1.bf16.msra.mxu0 %v125
    %154 = vmatprep.subr.bf16.mxu0 0
    %155 = vmatpush1.bf16.msra.mxu0 %v124
    %156 = vmatprep.subr.bf16.mxu0 0
    %157 = vmatpush2.bf16.msra.mxu0 0
    %158 = vmatprep.subr.bf16.mxu0 0
    %159 = vmatpush2.bf16.msra.mxu0 0
    %160 = vmatprep.subr.bf16.mxu0 0
    %161 = vmatpush2.bf16.msra.mxu0 0
    %162 = vmatprep.subr.bf16.mxu0 0
    %163 = vmatpush2.bf16.msra.mxu0 0
    %164 = vmatprep.subr.bf16.mxu0 0
    %165 = vmatpush2.bf16.msra.mxu0 0
    %166 = vmatprep.subr.bf16.mxu0 0
    %167 = vmatpush2.bf16.msra.mxu0 0
    %168 = vmatprep.subr.bf16.mxu0 0
    %169 = vmatpush2.bf16.msra.mxu0 0
    %170 = vmatprep.subr.bf16.mxu0 0
    %171 = vmatpush2.bf16.msra.mxu0 0
    %172 = vmatprep.mubr.bf16.mxu0 0
    %173 = vmatmul.mubr.bf16.gmra.mxu0 %v69
    %v174 = vpop.f32.mrf.mxu0
    %v175 = vadd.f32 %v91, %v174
    %v176 = vpop.f32.mrf.mxu0
    %v177 = vpop.f32.mrf.mxu0
    %v178 = vpop.f32.mrf.mxu0
    %179 = vdwg.mxu0
    %v180 = vmax.f32 %v175, 0.0
    %v181 = vpack.c.bf16 %v180, %v180
    %v182 = vld [vmem:[#allocation5] sm:$0xf]
    %v183 = vld [vmem:[#allocation5 + $0x4] sm:$0xf]
    %v184 = vld [vmem:[#allocation5 + $0x8] sm:$0xf]
    %v185 = vld [vmem:[#allocation5 + $0xc] sm:$0xf]
    %v186 = vld [vmem:[#allocation5 + $0x10] sm:$0xf]
    %v187 = vld [vmem:[#allocation5 + $0x14] sm:$0xf]
    %v188 = vld [vmem:[#allocation5 + $0x18] sm:$0xf]
    %v189 = vld [vmem:[#allocation5 + $0x1c] sm:$0xf]
    %v190 = vld [vmem:[#allocation5 + $0x20] sm:$0xf]
    %v191 = vld [vmem:[#allocation5 + $0x24] sm:$0xf]
    %v192 = vld [vmem:[#allocation5 + $0x28] sm:$0xf]
    %v193 = vld [vmem:[#allocation5 + $0x2c] sm:$0xf]
    %v194 = vld [vmem:[#allocation5 + $0x30] sm:$0xf]
    %v195 = vld [vmem:[#allocation5 + $0x34] sm:$0xf]
    %v196 = vld [vmem:[#allocation5 + $0x38] sm:$0xf]
    %v197 = vld [vmem:[#allocation5 + $0x3c] sm:$0xf]
    %v198 = vld [vmem:[%s4] sm:$0x1]
    %v199 = vunpack.c.l.bf16 %v198
    %v200 = vlaneseq
    %v201 = vshrl.u32 %v200, 7
    %v202 = vsub.s32 0, %v201
    %v203 = vrot.slane %v199, %v202
    %v220 = vunpack.c.l.b16 %v182
    %v221 = vunpack.c.l.b16 %v183
    %v222 = vunpack.c.l.b16 %v184
    %v223 = vunpack.c.l.b16 %v185
    %v224 = vunpack.c.l.b16 %v186
    %v225 = vunpack.c.l.b16 %v187
    %v226 = vunpack.c.l.b16 %v188
    %v227 = vunpack.c.l.b16 %v189
    %v228 = vunpack.c.l.b16 %v190
    %v229 = vunpack.c.l.b16 %v191
    %v230 = vunpack.c.l.b16 %v192
    %v231 = vunpack.c.l.b16 %v193
    %v232 = vunpack.c.l.b16 %v194
    %v233 = vunpack.c.l.b16 %v195
    %v234 = vunpack.c.l.b16 %v196
    %v235 = vunpack.c.l.b16 %v197
    %v236 = vpack.c.b16 %v221, %v220
    %v237 = vpack.c.b16 %v223, %v222
    %v238 = vpack.c.b16 %v225, %v224
    %v239 = vpack.c.b16 %v227, %v226
    %v240 = vpack.c.b16 %v229, %v228
    %v241 = vpack.c.b16 %v231, %v230
    %v242 = vpack.c.b16 %v233, %v232
    %v243 = vpack.c.b16 %v235, %v234
    %252 = vmatprep.subr.bf16.mxu0 0
    %253 = vmatpush1.bf16.msra.mxu0 %v243
    %254 = vmatprep.subr.bf16.mxu0 0
    %255 = vmatpush1.bf16.msra.mxu0 %v242
    %256 = vmatprep.subr.bf16.mxu0 0
    %257 = vmatpush1.bf16.msra.mxu0 %v241
    %258 = vmatprep.subr.bf16.mxu0 0
    %259 = vmatpush1.bf16.msra.mxu0 %v240
    %260 = vmatprep.subr.bf16.mxu0 0
    %261 = vmatpush1.bf16.msra.mxu0 %v239
    %262 = vmatprep.subr.bf16.mxu0 0
    %263 = vmatpush1.bf16.msra.mxu0 %v238
    %264 = vmatprep.subr.bf16.mxu0 0
    %265 = vmatpush1.bf16.msra.mxu0 %v237
    %266 = vmatprep.subr.bf16.mxu0 0
    %267 = vmatpush1.bf16.msra.mxu0 %v236
    %268 = vmatprep.subr.bf16.mxu0 0
    %269 = vmatpush2.bf16.msra.mxu0 0
    %270 = vmatprep.subr.bf16.mxu0 0
    %271 = vmatpush2.bf16.msra.mxu0 0
    %272 = vmatprep.subr.bf16.mxu0 0
    %273 = vmatpush2.bf16.msra.mxu0 0
    %274 = vmatprep.subr.bf16.mxu0 0
    %275 = vmatpush2.bf16.msra.mxu0 0
    %276 = vmatprep.subr.bf16.mxu0 0
    %277 = vmatpush2.bf16.msra.mxu0 0
    %278 = vmatprep.subr.bf16.mxu0 0
    %279 = vmatpush2.bf16.msra.mxu0 0
    %280 = vmatprep.subr.bf16.mxu0 0
    %281 = vmatpush2.bf16.msra.mxu0 0
    %282 = vmatprep.subr.bf16.mxu0 0
    %283 = vmatpush2.bf16.msra.mxu0 0
    %284 = vmatprep.mubr.bf16.mxu0 0
    %285 = vmatmul.mubr.bf16.gmra.mxu0 %v181
    %v286 = vpop.f32.mrf.mxu0
    %v287 = vadd.f32 %v203, %v286
    %v288 = vpop.f32.mrf.mxu0
    %v289 = vpop.f32.mrf.mxu0
    %v290 = vpop.f32.mrf.mxu0
    %291 = vdwg.mxu0
    %v292 = vmax.f32 %v287, 0.0
    %v293 = vpack.c.bf16 %v292, %v292
    %v294 = vld [vmem:[#allocation7] sm:$0xf]
    %v295 = vld [vmem:[#allocation7 + $0x4] sm:$0xf]
    %v296 = vld [vmem:[#allocation7 + $0x8] sm:$0xf]
    %v297 = vld [vmem:[#allocation7 + $0xc] sm:$0xf]
    %v298 = vld [vmem:[#allocation7 + $0x10] sm:$0xf]
    %v299 = vld [vmem:[#allocation7 + $0x14] sm:$0xf]
    %v300 = vld [vmem:[#allocation7 + $0x18] sm:$0xf]
    %v301 = vld [vmem:[#allocation7 + $0x1c] sm:$0xf]
    %v302 = vld [vmem:[#allocation7 + $0x20] sm:$0xf]
    %v303 = vld [vmem:[#allocation7 + $0x24] sm:$0xf]
    %v304 = vld [vmem:[#allocation7 + $0x28] sm:$0xf]
    %v305 = vld [vmem:[#allocation7 + $0x2c] sm:$0xf]
    %v306 = vld [vmem:[#allocation7 + $0x30] sm:$0xf]
    %v307 = vld [vmem:[#allocation7 + $0x34] sm:$0xf]
    %v308 = vld [vmem:[#allocation7 + $0x38] sm:$0xf]
    %v309 = vld [vmem:[#allocation7 + $0x3c] sm:$0xf]
    %v310 = vld [vmem:[%s6] sm:$0x1]
    %v311 = vunpack.c.l.bf16 %v310
    %v312 = vlaneseq
    %v313 = vshrl.u32 %v312, 7
    %v314 = vsub.s32 0, %v313
    %v315 = vrot.slane %v311, %v314
    %v332 = vunpack.c.l.b16 %v294
    %v333 = vunpack.c.l.b16 %v295
    %v334 = vunpack.c.l.b16 %v296
    %v335 = vunpack.c.l.b16 %v297
    %v336 = vunpack.c.l.b16 %v298
    %v337 = vunpack.c.l.b16 %v299
    %v338 = vunpack.c.l.b16 %v300
    %v339 = vunpack.c.l.b16 %v301
    %v340 = vunpack.c.l.b16 %v302
    %v341 = vunpack.c.l.b16 %v303
    %v342 = vunpack.c.l.b16 %v304
    %v343 = vunpack.c.l.b16 %v305
    %v344 = vunpack.c.l.b16 %v306
    %v345 = vunpack.c.l.b16 %v307
    %v346 = vunpack.c.l.b16 %v308
    %v347 = vunpack.c.l.b16 %v309
    %v348 = vpack.c.b16 %v333, %v332
    %v349 = vpack.c.b16 %v335, %v334
    %v350 = vpack.c.b16 %v337, %v336
    %v351 = vpack.c.b16 %v339, %v338
    %v352 = vpack.c.b16 %v341, %v340
    %v353 = vpack.c.b16 %v343, %v342
    %v354 = vpack.c.b16 %v345, %v344
    %v355 = vpack.c.b16 %v347, %v346
    %364 = vmatprep.subr.bf16.mxu0 0
    %365 = vmatpush1.bf16.msra.mxu0 %v355
    %366 = vmatprep.subr.bf16.mxu0 0
    %367 = vmatpush1.bf16.msra.mxu0 %v354
    %368 = vmatprep.subr.bf16.mxu0 0
    %369 = vmatpush1.bf16.msra.mxu0 %v353
    %370 = vmatprep.subr.bf16.mxu0 0
    %371 = vmatpush1.bf16.msra.mxu0 %v352
    %372 = vmatprep.subr.bf16.mxu0 0
    %373 = vmatpush1.bf16.msra.mxu0 %v351
    %374 = vmatprep.subr.bf16.mxu0 0
    %375 = vmatpush1.bf16.msra.mxu0 %v350
    %376 = vmatprep.subr.bf16.mxu0 0
    %377 = vmatpush1.bf16.msra.mxu0 %v349
    %378 = vmatprep.subr.bf16.mxu0 0
    %379 = vmatpush1.bf16.msra.mxu0 %v348
    %380 = vmatprep.subr.bf16.mxu0 0
    %381 = vmatpush2.bf16.msra.mxu0 0
    %382 = vmatprep.subr.bf16.mxu0 0
    %383 = vmatpush2.bf16.msra.mxu0 0
    %384 = vmatprep.subr.bf16.mxu0 0
    %385 = vmatpush2.bf16.msra.mxu0 0
    %386 = vmatprep.subr.bf16.mxu0 0
    %387 = vmatpush2.bf16.msra.mxu0 0
    %388 = vmatprep.subr.bf16.mxu0 0
    %389 = vmatpush2.bf16.msra.mxu0 0
    %390 = vmatprep.subr.bf16.mxu0 0
    %391 = vmatpush2.bf16.msra.mxu0 0
    %392 = vmatprep.subr.bf16.mxu0 0
    %393 = vmatpush2.bf16.msra.mxu0 0
    %394 = vmatprep.subr.bf16.mxu0 0
    %395 = vmatpush2.bf16.msra.mxu0 0
    %396 = vmatprep.mubr.bf16.mxu0 0
    %397 = vmatmul.mubr.bf16.gmra.mxu0 %v293
    %v398 = vpop.f32.mrf.mxu0
    %v399 = vadd.f32 %v315, %v398
    %v400 = vpop.f32.mrf.mxu0
    %v401 = vpop.f32.mrf.mxu0
    %v402 = vpop.f32.mrf.mxu0
    %403 = vdwg.mxu0
    %404 = vst [vmem:[#allocation8] sm:$0xff] %v399
    // Predicated region
    $region42: #{gapnet_forward_fused.1} parent=1 // pred_check
      _
    $region43: #{gapnet_forward_fused.1} parent=1 // pred_check_branch
      %406 = sbr.rel (0) target = $region45
    $region44: #{gapnet_forward_fused.1} parent=1 // pred_region
      %s408 = ssub.s32 128, 128
      %409 = vsyncadd [#allocation4], %s408
      %s411 = sshll.u32 [#allocation8], 4
      %s412 = int_to_ptr.vmem [resolvable:$true] %s411
      %414 = dma.vmem_to_hbm [thread:$0]  %s412, 128, %s7, [#allocation4]
    $region45: #{gapnet_forward_fused.1} parent=1 // pred_fallthru
      _
    // Predicated region
    $region46: #{gapnet_forward_fused.1} parent=1 // pred_check
      _
    $region47: #{gapnet_forward_fused.1} parent=1 // pred_check_branch
      %416 = sbr.rel (0) target = $region49
    $region48: #{gapnet_forward_fused.1} parent=1 // pred_region
      %417 = dma.done [#allocation4], 128
    $region49: #{gapnet_forward_fused.1} parent=1 // pred_fallthru
      _
    %418 = vsyncpa [#allocation3], 1
    %419 = vsyncpa [#allocation6], 1
    %420 = vsyncpa [#allocation4], 1

</llo_original>
